<compile_context>
chip_gen: v7x
topology: tpu7x:2x2x1
jax: 0.10.0
libtpu: 0.0.40
codegen_flags: <defaults>
</compile_context>

<pallas_src>
import math

import jax
import jax.numpy as jnp
from jax.experimental import pallas as pl
from jax.experimental.pallas import tpu as pltpu


_SQRT_2_OVER_PI = 0.7978845608028654
_LANE = 128
_SUBLANE = 8


def _round_up(v: int, m: int) -> int:
    return ((v + m - 1) // m) * m


def _gelu_softmax_epilogue(z, out_valid: int, out_padded: int):
    """f32 GELU(tanh approx) + row softmax; padded OUT columns masked to -inf."""
    g = 0.5 * z * (1.0 + jnp.tanh(_SQRT_2_OVER_PI * z * (1.0 + 0.044715 * z * z)))
    if out_valid != out_padded:
        col = jax.lax.broadcasted_iota(jnp.int32, g.shape, 1)
        g = jnp.where(col < out_valid, g, -jnp.inf)
    m = jnp.max(g, axis=-1, keepdims=True)
    e = jnp.exp(g - m)
    s = jnp.sum(e, axis=-1, keepdims=True)
    # Approx reciprocal goes to the EUP slot (effectively free next to exp/tanh).
    return e * pl.reciprocal(s, approx=True)


def _make_resident_kernel(out_valid: int, out_padded: int):
    """Whole weight resident in VMEM; single matmul per batch tile."""

    def kernel(x_ref, wt_ref, b_ref, o_ref):
        # x_ref: [TB, IN] bf16   wt_ref: [IN, OUT_pad] bf16 (resident)
        # b_ref: [1, OUT_pad] f32   o_ref: [TB, OUT_pad]
        z = jnp.dot(x_ref[...], wt_ref[...], preferred_element_type=jnp.float32)
        z = z + b_ref[...]
        o_ref[...] = _gelu_softmax_epilogue(z, out_valid, out_padded).astype(o_ref.dtype)

    return kernel


def _make_streaming_kernel(out_valid: int, out_padded: int):
    """Weight streamed in (tk, OUT_pad) blocks over a K grid axis."""

    def kernel(x_ref, wt_ref, b_ref, o_ref, acc_ref):
        k = pl.program_id(1)

        @pl.when(k == 0)
        def _():
            acc_ref[...] = jnp.zeros_like(acc_ref)

        acc_ref[...] += jnp.dot(
            x_ref[...], wt_ref[...], preferred_element_type=jnp.float32)

        @pl.when(k == pl.num_programs(1) - 1)
        def _():
            z = acc_ref[...] + b_ref[...]
            o_ref[...] = _gelu_softmax_epilogue(
                z, out_valid, out_padded).astype(o_ref.dtype)

    return kernel


def _vmem_capacity_bytes() -> int:
    try:
        return int(pltpu.get_tpu_info().vmem_capacity_bytes)
    except Exception:
        return 128 * 1024 * 1024  # conservative v5e/v6e default


def make_fused_forward(weight, bias, *, matmul_dtype=jnp.bfloat16, block_b: int = 512):
    """One-time parameter prep; returns a jitted forward(x) -> softmax(gelu(x@W.T+b)).

    weight: [OUT, IN] (nn.Linear layout), bias: [OUT].
    """
    out_features, in_features = weight.shape
    out_pad = max(_LANE, _round_up(out_features, _LANE))
    w_itemsize = jnp.dtype(matmul_dtype).itemsize

    vmem_cap = _vmem_capacity_bytes()
    vmem_budget = int(0.85 * vmem_cap)  # leave headroom for Mosaic internal scratch

    # Pallas double-buffers every input, even with a constant index_map, so the
    # resident weight really costs 2x.  If that blows the budget (e.g. v7x's
    # 64 MiB per-TC VMEM), fall back to streaming K-blocks.
    resident_weight_bytes = 2 * in_features * out_pad * w_itemsize
    streaming = resident_weight_bytes > int(0.55 * vmem_cap)

    # --- one-time layout prep (transpose, pad, cast) -------------------------
    w_t = jnp.transpose(weight).astype(matmul_dtype)  # [IN, OUT]
    if out_pad != out_features:
        w_t = jnp.pad(w_t, ((0, 0), (0, out_pad - out_features)))
        bias_p = jnp.pad(bias, (0, out_pad - out_features))
    else:
        bias_p = bias
    bias2d = bias_p.astype(jnp.float32).reshape(1, out_pad)

    tk = 0
    in_pad = in_features
    if streaming:
        # tk must be a multiple of 128 (lane dim of the x block); prefer one
        # that divides IN so x needs no per-call padding.
        tk = 512
        for cand in (2048, 1024, 512, 256, 128):
            if in_features % cand == 0:
                tk = cand
                break
        in_pad = _round_up(in_features, tk)
        if in_pad != in_features:
            # Zero K-padding is exact (contributes 0 to the accumulator).
            w_t = jnp.pad(w_t, ((0, in_pad - in_features), (0, 0)))

    w_t = jax.device_put(w_t)
    bias2d = jax.device_put(bias2d)

    kernel = (_make_streaming_kernel if streaming else _make_resident_kernel)(
        out_features, out_pad)

    def forward(x):
        B = x.shape[0]
        out_dtype = x.dtype
        out_itemsize = jnp.dtype(out_dtype).itemsize

        # Batch tile: big tiles amortize the ~0.35us/step overhead; for small B
        # split into >=2 tiles so v7x's second TensorCore is not idle.
        if B <= 2 * block_b:
            tb = min(B, _round_up(max(pl.cdiv(B, 2), 1), _SUBLANE))
        else:
            tb = block_b
        if tb < B and tb % _SUBLANE != 0:
            tb = _round_up(tb, _SUBLANE)
        nb = pl.cdiv(B, tb)

        xm = x.astype(matmul_dtype)

        flops = 2 * B * in_pad * out_pad
        transcendentals = 2 * B * out_pad  # one tanh + one exp per output elem
        bytes_accessed = (B * in_pad * w_itemsize
                          + in_pad * out_pad * w_itemsize
                          + out_pad * 4
                          + B * out_pad * out_itemsize)
        cost = pl.CostEstimate(flops=flops, transcendentals=transcendentals,
                               bytes_accessed=bytes_accessed)

        if not streaming:
            need = (2 * in_pad * out_pad * w_itemsize      # resident weight (x2 bufs)
                    + 2 * out_pad * 4                      # bias (x2 bufs)
                    + 2 * tb * in_pad * w_itemsize         # x tiles
                    + 2 * tb * out_pad * out_itemsize)     # out tiles
            vmem_limit = int(min(max(int(1.25 * need), 32 * 1024 * 1024),
                                 vmem_budget))
            out = pl.pallas_call(
                kernel,
                out_shape=jax.ShapeDtypeStruct((B, out_pad), out_dtype),
                grid_spec=pl.GridSpec(
                    grid=(nb,),
                    in_specs=[
                        pl.BlockSpec((tb, in_pad), lambda i: (i, 0)),     # x
                        pl.BlockSpec((in_pad, out_pad), lambda i: (0, 0)),  # W^T (resident)
                        pl.BlockSpec((1, out_pad), lambda i: (0, 0)),     # bias
                    ],
                    out_specs=pl.BlockSpec((tb, out_pad), lambda i: (i, 0)),
                ),
                compiler_params=pltpu.CompilerParams(
                    dimension_semantics=("parallel",),
                    vmem_limit_bytes=vmem_limit,
                ),
                cost_estimate=cost,
            )(xm, w_t, bias2d)
        else:
            if in_pad != in_features:
                xm = jnp.pad(xm, ((0, 0), (0, in_pad - in_features)))
            nk = in_pad // tk
            need = (2 * tk * out_pad * w_itemsize          # weight blocks (x2 bufs)
                    + 2 * out_pad * 4                      # bias
                    + 2 * tb * tk * w_itemsize             # x tiles
                    + 2 * tb * out_pad * out_itemsize      # out tiles
                    + tb * out_pad * 4)                    # f32 accumulator scratch
            vmem_limit = int(min(max(int(1.25 * need), 32 * 1024 * 1024),
                                 vmem_budget))
            out = pl.pallas_call(
                kernel,
                out_shape=jax.ShapeDtypeStruct((B, out_pad), out_dtype),
                grid_spec=pl.GridSpec(
                    grid=(nb, nk),
                    in_specs=[
                        pl.BlockSpec((tb, tk), lambda i, k: (i, k)),       # x
                        pl.BlockSpec((tk, out_pad), lambda i, k: (k, 0)),  # W^T blocks
                        pl.BlockSpec((1, out_pad), lambda i, k: (0, 0)),   # bias
                    ],
                    out_specs=pl.BlockSpec((tb, out_pad), lambda i, k: (i, 0)),
                    scratch_shapes=[pltpu.VMEM((tb, out_pad), jnp.float32)],
                ),
                compiler_params=pltpu.CompilerParams(
                    dimension_semantics=("parallel", "arbitrary"),
                    vmem_limit_bytes=vmem_limit,
                ),
                cost_estimate=cost,
            )(xm, w_t, bias2d)

        if out_pad != out_features:
            out = out[:, :out_features]
        return out

    return jax.jit(forward)


def fused_linear_gelu_softmax(x, weight, bias, **kwargs):
    """Convenience one-shot API.  In a real model, hoist make_fused_forward()."""
    return make_fused_forward(weight, bias, **kwargs)(x)


def init_params(key, in_features, out_features):
    """Deterministic init mimicking nn.Linear's kaiming_uniform_(a=sqrt(5))."""
    kw, kb = jax.random.split(key)
    bound = 1.0 / math.sqrt(in_features)
    weight = jax.random.uniform(
        kw, (out_features, in_features), jnp.float32, -bound, bound)
    bias = jax.random.uniform(kb, (out_features,), jnp.float32, -bound, bound)
    return weight, bias


if __name__ == "__main__":
    key = jax.random.PRNGKey(0)
    k_x, k_p = jax.random.split(key)

    batch = 8
    in_features = 32
    out_features = 16

    x = jax.random.normal(k_x, (batch, in_features), dtype=jnp.float32)
    weight, bias = init_params(k_p, in_features, out_features)

    forward = make_fused_forward(weight, bias)   # one-time prep (transpose/pad/bf16)
    out = jax.block_until_ready(forward(x))

    # Plain-JAX f32 reference.
    z = x @ weight.T + bias[None, :]
    g = 0.5 * z * (1.0 + jnp.tanh(_SQRT_2_OVER_PI * (z + 0.044715 * z ** 3)))
    ref = jax.nn.softmax(g, axis=-1)

    assert out.shape == (batch, out_features)
    assert bool(jnp.all(jnp.isfinite(out)))
    # Rows sum ~1 (approx reciprocal -> ~1e-3 relative error on the denominator).
    assert bool(jnp.all(jnp.abs(jnp.sum(out, axis=-1) - 1.0) < 5e-3))
    # bf16 matmul operands + approx reciprocal: looser tolerance vs the f32 ref.
    assert jnp.allclose(out, ref, atol=2e-2, rtol=5e-2), "mismatch vs reference"

    print("KERNEL_OK")
</pallas_src>

<mosaic_0001>
module attributes {stable_mosaic.version = 11 : i64} {
  func.func @kernel(%arg0: i32, %arg1: memref<8x32xbf16, #tpu.memory_space<vmem>>, %arg2: memref<32x128xbf16, #tpu.memory_space<vmem>>, %arg3: memref<1x128xf32, #tpu.memory_space<vmem>>, %arg4: memref<8x128xf32, #tpu.memory_space<vmem>>) attributes {dimension_semantics = [#tpu.dimension_semantics<parallel>], iteration_bounds = array<i64: 1>, scalar_prefetch = 0 : i64, scratch_operands = 0 : i64, tpu.core_type = #tpu.core_type<tc>, window_params = [{transform_indices = @transform_0, window_bounds = array<i64: 8, 32>}, {pipeline_mode = #tpu.pipeline_mode<synchronous>, transform_indices = @transform_1, window_bounds = array<i64: 32, 128>}, {pipeline_mode = #tpu.pipeline_mode<synchronous>, transform_indices = @transform_2, window_bounds = array<i64: 1, 128>}, {transform_indices = @transform_3, window_bounds = array<i64: 8, 128>}]} {
    %c0 = arith.constant 0 : index
    %c0_0 = arith.constant 0 : index
    %0 = vector.load %arg1[%c0, %c0_0] : memref<8x32xbf16, #tpu.memory_space<vmem>>, vector<8x32xbf16>
    %c0_1 = arith.constant 0 : index
    %c0_2 = arith.constant 0 : index
    %1 = vector.load %arg2[%c0_1, %c0_2] : memref<32x128xbf16, #tpu.memory_space<vmem>>, vector<32x128xbf16>
    %cst = arith.constant dense<0.000000e+00> : vector<8x128xf32>
    %2 = tpu.matmul %0, %1, %cst {dimension_numbers = #tpu.dot_dimension_numbers<[1], [0], [0], [1], [0, 0, 1, 1], [], []>} : vector<8x32xbf16>, vector<32x128xbf16>, vector<8x128xf32> -> vector<8x128xf32>
    %c0_3 = arith.constant 0 : index
    %c0_4 = arith.constant 0 : index
    %3 = vector.load %arg3[%c0_3, %c0_4] : memref<1x128xf32, #tpu.memory_space<vmem>>, vector<1x128xf32>
    %4 = vector.broadcast %3 : vector<1x128xf32> to vector<8x128xf32>
    %5 = arith.addf %2, %4 : vector<8x128xf32>
    %cst_5 = arith.constant 5.000000e-01 : f32
    %6 = vector.broadcast %cst_5 : f32 to vector<8x128xf32>
    %7 = arith.mulf %6, %5 : vector<8x128xf32>
    %cst_6 = arith.constant 0.797884583 : f32
    %8 = vector.broadcast %cst_6 : f32 to vector<8x128xf32>
    %9 = arith.mulf %8, %5 : vector<8x128xf32>
    %cst_7 = arith.constant 4.471500e-02 : f32
    %10 = vector.broadcast %cst_7 : f32 to vector<8x128xf32>
    %11 = arith.mulf %10, %5 : vector<8x128xf32>
    %12 = arith.mulf %11, %5 : vector<8x128xf32>
    %cst_8 = arith.constant 1.000000e+00 : f32
    %13 = vector.broadcast %cst_8 : f32 to vector<8x128xf32>
    %14 = arith.addf %13, %12 : vector<8x128xf32>
    %15 = arith.mulf %9, %14 : vector<8x128xf32>
    %16 = math.tanh %15 : vector<8x128xf32>
    %cst_9 = arith.constant 1.000000e+00 : f32
    %17 = vector.broadcast %cst_9 : f32 to vector<8x128xf32>
    %18 = arith.addf %17, %16 : vector<8x128xf32>
    %19 = arith.mulf %7, %18 : vector<8x128xf32>
    %20 = tpu.iota {dimensions = array<i32: 1>} : vector<8x128xi32>
    %c16_i32 = arith.constant 16 : i32
    %21 = vector.broadcast %c16_i32 : i32 to vector<8x128xi32>
    %22 = arith.cmpi slt, %20, %21 : vector<8x128xi32>
    %cst_10 = arith.constant 0xFF800000 : f32
    %23 = vector.broadcast %cst_10 : f32 to vector<8x128xf32>
    %24 = arith.select %22, %19, %23 : vector<8x128xi1>, vector<8x128xf32>
    %cst_11 = arith.constant dense<0xFF800000> : vector<8xf32>
    %25 = vector.multi_reduction <maximumf>, %24, %cst_11 [1] : vector<8x128xf32> to vector<8xf32>
    %26 = vector.shape_cast %25 : vector<8xf32> to vector<8x1xf32>
    %27 = vector.broadcast %26 : vector<8x1xf32> to vector<8x128xf32>
    %28 = arith.subf %24, %27 : vector<8x128xf32>
    %29 = math.exp %28 : vector<8x128xf32>
    %cst_12 = arith.constant dense<0.000000e+00> : vector<8xf32>
    %30 = vector.multi_reduction <add>, %29, %cst_12 [1] : vector<8x128xf32> to vector<8xf32>
    %31 = vector.shape_cast %30 : vector<8xf32> to vector<8x1xf32>
    %32 = tpu.reciprocal %31 {approx = true} : vector<8x1xf32> -> vector<8x1xf32>
    %33 = vector.broadcast %32 : vector<8x1xf32> to vector<8x128xf32>
    %34 = arith.mulf %29, %33 : vector<8x128xf32>
    %c0_13 = arith.constant 0 : index
    %c0_14 = arith.constant 0 : index
    %35 = vector.load %arg4[%c0_13, %c0_14] : memref<8x128xf32, #tpu.memory_space<vmem>>, vector<8x128xf32>
    tpu.vector_store %arg4[%c0_13, %c0_14], %34 {strides = array<i32>} : memref<8x128xf32, #tpu.memory_space<vmem>>, vector<8x128xf32>,
    return
  }
  func.func @transform_0(%arg0: i32) -> (i32, i32) {
    %c0_i32 = arith.constant 0 : i32
    %c0_i32_0 = arith.constant 0 : i32
    return %arg0, %c0_i32 : i32, i32
  }
  func.func @transform_1(%arg0: i32) -> (i32, i32) {
    %c0_i32 = arith.constant 0 : i32
    %c0_i32_0 = arith.constant 0 : i32
    %c0_i32_1 = arith.constant 0 : i32
    return %c0_i32, %c0_i32_0 : i32, i32
  }
  func.func @transform_2(%arg0: i32) -> (i32, i32) {
    %c0_i32 = arith.constant 0 : i32
    %c0_i32_0 = arith.constant 0 : i32
    %c0_i32_1 = arith.constant 0 : i32
    return %c0_i32, %c0_i32_0 : i32, i32
  }
  func.func @transform_3(%arg0: i32) -> (i32, i32) {
    %c0_i32 = arith.constant 0 : i32
    %c0_i32_0 = arith.constant 0 : i32
    return %arg0, %c0_i32 : i32, i32
  }
}

</mosaic_0001>

<llo_original>
// kernel: forward.1
$region0: #{forward.1}
  #allocation0 [shape = 'u32[]', space=smem, size = 0x4, offset = 0x4, fixed_abs, tag = 'smem constant byte address 0x4 - core index']
  #allocation1 [shape = 'u32[144,128]{1,0:T(1,128)}', space=vmem, size = 0x12000, scoped, tag = 'internal scratch']
  %s0 = inlined_call_operand.vmem [shape: bf16[8,32], index: 0, kind: input, shape index: {}]
  %s1 = inlined_call_operand.vmem [shape: bf16[32,128], index: 1, kind: input, shape index: {}]
  %s2 = inlined_call_operand.vmem [shape: f32[1,128], index: 2, kind: input, shape index: {}]
  %s3 = inlined_call_operand.hbm [shape: f32[8,128], index: 3, kind: output, shape index: {}]
  %s4 = sld [smem:[#allocation0]]
  $region22: #{forward.1} parent=0
    _
  %s6 = ssub.s32 1, %s4
  %s7 = scalar_select 0, %s6, %s4
  $region1: #{forward.1} parent=0
    #allocation2 [shape = 'u8[4096]{0}', space=vmem, size = 0x1000, scoped, tag = 'output window, operand 0, single buffered']
    #allocation3 [shape = 's32[1]{0}', space=sflag, size = 0x4, scoped, tag = 'scoped memory for forward.1']
    %8 = vsyncpa [#allocation3], 0
    // Predicated region
    $region2: #{forward.1} parent=1 // pred_check
      _
    $region3: #{forward.1} parent=1 // pred_check_branch
      %10 = sbr.rel (0) target = $region5
    $region4: #{forward.1} parent=1 // pred_region
      _
    $region5: #{forward.1} parent=1 // pred_fallthru
      _
    // Predicated region
    $region6: #{forward.1} parent=1 // pred_check
      _
    $region7: #{forward.1} parent=1 // pred_check_branch
      %12 = sbr.rel (0) target = $region9
    $region8: #{forward.1} parent=1 // pred_region
      _
    $region9: #{forward.1} parent=1 // pred_fallthru
      _
    // Predicated region
    $region10: #{forward.1} parent=1 // pred_check
      _
    $region11: #{forward.1} parent=1 // pred_check_branch
      %14 = sbr.rel (0) target = $region13
    $region12: #{forward.1} parent=1 // pred_region
      _
    $region13: #{forward.1} parent=1 // pred_fallthru
      _
    %v16 = vld [vmem:[%s0] sm:$0xf]
    %v17 = vld [vmem:[%s1] sm:$0xf]
    %v18 = vld [vmem:[%s1 + $0x4] sm:$0xf]
    %v19 = vld [vmem:[%s1 + $0x8] sm:$0xf]
    %v20 = vld [vmem:[%s1 + $0xc] sm:$0xf]
    %v21 = vld [vmem:[%s2] sm:$0x1]
    %v23 = vlaneseq
    %v24 = vshrl.u32 %v23, 7
    %v25 = vsub.s32 0, %v24
    %v26 = vrot.slane %v21, %v25
    %v32 = vunpack.c.l.b16 %v17
    %v33 = vunpack.c.l.b16 %v18
    %v34 = vunpack.c.l.b16 %v19
    %v35 = vunpack.c.l.b16 %v20
    %v36 = vpack.c.b16 %v33, %v32
    %v37 = vpack.c.b16 %v35, %v34
    %vm40 = vcmask 261120
    %v42 = vsel %vm40, %v16, 0
    %44 = vmatprep.subr.bf16.mxu0 0
    %45 = vmatpush1.bf16.msra.mxu0 %v36
    %46 = vmatprep.subr.bf16.mxu0 0
    %47 = vmatpush1.bf16.msra.mxu0 %v37
    %48 = vmatprep.subr.bf16.mxu0 0
    %49 = vmatpush1.bf16.msra.mxu0 0
    %50 = vmatprep.subr.bf16.mxu0 0
    %51 = vmatpush1.bf16.msra.mxu0 0
    %52 = vmatprep.subr.bf16.mxu0 0
    %53 = vmatpush1.bf16.msra.mxu0 0
    %54 = vmatprep.subr.bf16.mxu0 0
    %55 = vmatpush1.bf16.msra.mxu0 0
    %56 = vmatprep.subr.bf16.mxu0 0
    %57 = vmatpush1.bf16.msra.mxu0 0
    %58 = vmatprep.subr.bf16.mxu0 0
    %59 = vmatpush1.bf16.msra.mxu0 0
    %60 = vmatprep.subr.bf16.mxu0 0
    %61 = vmatpush1.bf16.msra.mxu0 0
    %62 = vmatprep.subr.bf16.mxu0 0
    %63 = vmatpush1.bf16.msra.mxu0 0
    %64 = vmatprep.subr.bf16.mxu0 0
    %65 = vmatpush1.bf16.msra.mxu0 0
    %66 = vmatprep.subr.bf16.mxu0 0
    %67 = vmatpush1.bf16.msra.mxu0 0
    %68 = vmatprep.subr.bf16.mxu0 0
    %69 = vmatpush1.bf16.msra.mxu0 0
    %70 = vmatprep.subr.bf16.mxu0 0
    %71 = vmatpush1.bf16.msra.mxu0 0
    %72 = vmatprep.subr.bf16.mxu0 0
    %73 = vmatpush1.bf16.msra.mxu0 0
    %74 = vmatprep.subr.bf16.mxu0 0
    %75 = vmatpush1.bf16.msra.mxu0 0
    %76 = vmatprep.mubr.bf16.mxu0 0
    %77 = vmatmul.mubr.bf16.gmra.mrb[0].mxu0 %v42
    %v78 = vpop.f32.mrb[0].mxu0
    %v79 = vadd.f32 %v26, %v78
    %v80 = vpop.f32.mrb[0].mxu0
    %v81 = vpop.f32.mrb[0].mxu0
    %v82 = vpop.f32.mrb[0].mxu0
    %83 = vdwg.mxu0
    %v84 = vmul.f32 %v79, 0.5
    %v85 = vmul.f32 %v79, 0.7978846
    %v86 = vmul.f32 %v79, 0.044715
    %v87 = vmul.f32 %v86, %v79
    %v88 = vadd.f32 %v87, 1.0
    %v89 = vmul.f32 %v85, %v88
    %v90 = vtanh.pop %v89
    %v91 = vadd.f32 %v90, 1.0
    %v92 = vmul.f32 %v84, %v91
    %v93 = vlaneseq
    %v94 = vand.u32 %v93, 127
    %vm95 = vcmp.lt.s32.totalorder %v94, 16
    %v96 = vsel %vm95, %v92, -inf
    %97 = vmax.xlane.f32.xlu0 %v96
    %v98 = vpop.xlane.xlu0 %97
    %v99 = vsub.f32 %v96, %v98
    %v100 = vmul.f32 %v99, 1.442695
    %v101 = vpow.pop %v100
    %102 = vadd.xlane.f32.xlu0 %v101
    %v103 = vpop.xlane.xlu0 %102
    %v104 = vrcp.pop %v103
    %v105 = vmul.f32 %v101, %v104
    %106 = vst [vmem:[#allocation2] sm:$0xff] %v105
    // Predicated region
    $region14: #{forward.1} parent=1 // pred_check
      _
    $region15: #{forward.1} parent=1 // pred_check_branch
      %108 = sbr.rel (0) target = $region17
    $region16: #{forward.1} parent=1 // pred_region
      %s110 = ssub.s32 128, 128
      %111 = vsyncadd [#allocation3], %s110
      %s113 = sshll.u32 [#allocation2], 4
      %s114 = int_to_ptr.vmem [resolvable:$true] %s113
      %116 = dma.vmem_to_hbm [thread:$0]  %s114, 128, %s3, [#allocation3]
    $region17: #{forward.1} parent=1 // pred_fallthru
      _
    // Predicated region
    $region18: #{forward.1} parent=1 // pred_check
      _
    $region19: #{forward.1} parent=1 // pred_check_branch
      %118 = sbr.rel (0) target = $region21
    $region20: #{forward.1} parent=1 // pred_region
      %119 = dma.done [#allocation3], 128
    $region21: #{forward.1} parent=1 // pred_fallthru
      _
    %120 = vsyncpa [#allocation3], 1

</llo_original>
